<compile_context>
chip_gen: v7x
topology: tpu7x:2x2x1
jax: 0.10.0
libtpu: 0.0.40
codegen_flags: <defaults>
</compile_context>

<pallas_src>
import jax
import jax.numpy as jnp
from jax.experimental import pallas as pl
from jax.experimental.pallas import tpu as pltpu

_HEAD = 8  # channel rows 0..7 = x, y, w, h, im, re, conf, cls0


def _yolo_kernel(x_ref, scale_ref, offset_ref, o_ref):
    """Whole-tile YOLO head transform + in-kernel transpose.

    x_ref:      VMEM [BA_T, C7, GG]   raw conv outputs (native dtype)
    scale_ref:  VMEM [BA_T, 8, 1]     per-row multiplicative scale (resident)
    offset_ref: VMEM [1, 8, GG]       per-row additive grid offsets (resident)
    o_ref:      VMEM [BA_T, GG, C7]   transformed predictions (spatial, channel)
    """
    p = x_ref[...].astype(jnp.float32)          # [BA_T, C7, GG]
    ba_t, c7, gg = p.shape

    # Sigmoid is needed for every channel except w/h (exp) and im/re (identity):
    # compute it once over the full tile on the EUP (lanes = GG, fully dense).
    s = jax.nn.sigmoid(p)

    # Non-sigmoid channels all live in the first (aligned) 8-row sublane slice.
    head = p[:, 0:_HEAD, :]                     # [BA_T, 8, GG]
    e = jnp.exp(head)                           # EUP, 8 rows only
    r = jax.lax.broadcasted_iota(jnp.int32, (1, _HEAD, gg), 1)
    head_out = jnp.where((r == 2) | (r == 3), e,
                         jnp.where((r == 4) | (r == 5), head, s[:, 0:_HEAD, :]))
    # One fused FMA: stride scaling (x/y), raw anchor scaling (w/h), grid offs.
    head_out = head_out * scale_ref[...] + offset_ref[...]

    # Emit [GG, C7] per slab (XLU transposes, separate issue slot) so the
    # wrapper only does free reshapes.  Rows >= 8 are plain sigmoid: store the
    # sigmoid slab in full, then patch the first 8 channels (offset-0 store).
    for k in range(ba_t):
        if c7 > _HEAD:
            o_ref[k] = s[k].T
            o_ref[k, :, 0:_HEAD] = head_out[k].T
        else:
            o_ref[k] = head_out[k].T


def _choose_ba_tile(B, A, C7, GG, in_elt_bytes,
                    vmem_budget=10 * 1024 * 1024, max_slabs=32):
    """Largest BA tile (multiple of A, dividing B*A, capped unroll) in budget."""
    def rup(x, m):
        return ((x + m - 1) // m) * m
    in_slab = rup(C7, 8) * rup(GG, 128) * in_elt_bytes
    out_slab = rup(GG, 8) * rup(C7, 128) * 4            # f32, lane-padded
    per_slab = 2 * (in_slab + out_slab)                 # double-buffered in+out
    best = A
    for bt in range(1, B + 1):
        ba = A * bt
        if B % bt == 0 and ba <= max_slabs and ba * per_slab <= vmem_budget:
            best = max(best, ba)
    return best


def yolo_layer_forward(x, anchors, num_classes, img_dim):
    """Pallas implementation of YOLOLayer.forward(x, targets=None, img_dim).

    x:        [B, A*(num_classes+7), G, G]  (NCHW conv output, any float dtype)
    anchors:  f32[A, >=2]  rows (a_w, a_h, ...); only a_w, a_h used here.
    returns:  (output f32[B, A*G*G, 7+num_classes], 0)
    """
    B, cin, G, G2 = x.shape
    assert G == G2
    A = anchors.shape[0]
    C7 = num_classes + 7
    assert cin == A * C7 and C7 >= _HEAD
    GG = G * G
    stride = float(img_dim) / float(G)

    # Free reshape (row-major preserving); keep native dtype (upcast in-kernel).
    xr = x.reshape(B * A, C7, GG)

    # Per-anchor scale for the 8 head rows: stride for x/y, raw anchor w/h for
    # w/h (folds the /stride then *stride round trip), 1 elsewhere.
    scale = jnp.ones((A, _HEAD), jnp.float32)
    scale = scale.at[:, 0].set(stride).at[:, 1].set(stride)
    scale = scale.at[:, 2].set(anchors[:, 0].astype(jnp.float32))
    scale = scale.at[:, 3].set(anchors[:, 1].astype(jnp.float32))

    # Grid offsets [1, 8, GG]: row0 = gx*stride, row1 = gy*stride, rest 0.
    flat = jnp.arange(GG, dtype=jnp.int32)
    gx = (flat % G).astype(jnp.float32) * stride
    gy = (flat // G).astype(jnp.float32) * stride
    offset = jnp.zeros((_HEAD, GG), jnp.float32)
    offset = offset.at[0].set(gx).at[1].set(gy)
    offset = offset[None]                               # [1, 8, GG]

    in_elt_bytes = jnp.dtype(x.dtype).itemsize
    ba_t = _choose_ba_tile(B, A, C7, GG, in_elt_bytes)
    scale_tile = jnp.tile(scale, (ba_t // A, 1))[:, :, None]   # [BA_T, 8, 1]

    grid = ((B * A) // ba_t,)
    out_blocks = pl.pallas_call(
        _yolo_kernel,
        out_shape=jax.ShapeDtypeStruct((B * A, GG, C7), jnp.float32),
        grid=grid,
        in_specs=[
            pl.BlockSpec((ba_t, C7, GG), lambda i: (i, 0, 0)),    # predictions
            pl.BlockSpec((ba_t, _HEAD, 1), lambda i: (0, 0, 0)),  # scale (res.)
            pl.BlockSpec((1, _HEAD, GG), lambda i: (0, 0, 0)),    # offset (res.)
        ],
        out_specs=pl.BlockSpec((ba_t, GG, C7), lambda i: (i, 0, 0)),
        compiler_params=pltpu.CompilerParams(
            dimension_semantics=("parallel",),
            vmem_limit_bytes=32 * 1024 * 1024),
    )(xr, scale_tile, offset)

    # Free reshape to the PyTorch output layout [B, A*G*G, 7+num_classes].
    output = out_blocks.reshape(B, A * GG, C7)
    return output, 0


def _yolo_ref(x, anchors, num_classes, img_dim):
    """Pure-JAX reference mirroring the PyTorch forward (targets=None)."""
    B, cin, G, _ = x.shape
    A = anchors.shape[0]
    C7 = num_classes + 7
    stride = float(img_dim) / float(G)
    pred = x.astype(jnp.float32).reshape(B, A, C7, G, G).transpose(0, 1, 3, 4, 2)
    sx = jax.nn.sigmoid(pred[..., 0])
    sy = jax.nn.sigmoid(pred[..., 1])
    w = pred[..., 2]
    h = pred[..., 3]
    im = pred[..., 4]
    re = pred[..., 5]
    conf = jax.nn.sigmoid(pred[..., 6])
    cls = jax.nn.sigmoid(pred[..., 7:])
    gxg = jnp.arange(G, dtype=jnp.float32).reshape(1, 1, 1, G)
    gyg = jnp.arange(G, dtype=jnp.float32).reshape(1, 1, G, 1)
    aw = (anchors[:, 0] / stride).reshape(1, A, 1, 1)
    ah = (anchors[:, 1] / stride).reshape(1, A, 1, 1)
    bx = sx + gxg
    by = sy + gyg
    bw = jnp.exp(w) * aw
    bh = jnp.exp(h) * ah
    boxes4 = jnp.stack([bx, by, bw, bh], -1).reshape(B, -1, 4) * stride
    imre = jnp.stack([im, re], -1).reshape(B, -1, 2)
    return jnp.concatenate(
        [boxes4, imre, conf.reshape(B, -1, 1), cls.reshape(B, -1, num_classes)],
        axis=-1)


if __name__ == "__main__":
    key = jax.random.PRNGKey(0)
    B = 2
    num_classes = 9
    G = 16
    img_dim = 416
    # anchors as (a_w, a_h, im, re) tuples, deterministic in-script
    anchors = jnp.array([[116.0, 90.0, 0.0, 1.0],
                         [156.0, 198.0, 0.5, 0.5]], dtype=jnp.float32)
    A = anchors.shape[0]
    C7 = num_classes + 7

    x = jax.random.normal(key, (B, A * C7, G, G), dtype=jnp.float32)

    out, loss = yolo_layer_forward(x, anchors, num_classes, img_dim)
    out = jax.block_until_ready(out)

    ref = _yolo_ref(x, anchors, num_classes, img_dim)
    assert out.shape == (B, A * G * G, 7 + num_classes), out.shape
    assert jnp.allclose(out, ref, rtol=1e-5, atol=1e-4), "mismatch vs reference"
    assert loss == 0

    print("KERNEL_OK")
</pallas_src>

<mosaic_0001>
module attributes {stable_mosaic.version = 11 : i64} {
  func.func @_yolo_kernel(%arg0: i32, %arg1: memref<4x16x256xf32, #tpu.memory_space<vmem>>, %arg2: memref<4x8x1xf32, #tpu.memory_space<vmem>>, %arg3: memref<1x8x256xf32, #tpu.memory_space<vmem>>, %arg4: memref<4x256x16xf32, #tpu.memory_space<vmem>>) attributes {dimension_semantics = [#tpu.dimension_semantics<parallel>], iteration_bounds = array<i64: 1>, scalar_prefetch = 0 : i64, scratch_operands = 0 : i64, tpu.core_type = #tpu.core_type<tc>, window_params = [{transform_indices = @transform_0, window_bounds = array<i64: 4, 16, 256>}, {pipeline_mode = #tpu.pipeline_mode<synchronous>, transform_indices = @transform_1, window_bounds = array<i64: 4, 8, 1>}, {pipeline_mode = #tpu.pipeline_mode<synchronous>, transform_indices = @transform_2, window_bounds = array<i64: 1, 8, 256>}, {transform_indices = @transform_3, window_bounds = array<i64: 4, 256, 16>}]} {
    %c0 = arith.constant 0 : index
    %c0_0 = arith.constant 0 : index
    %c0_1 = arith.constant 0 : index
    %0 = vector.load %arg1[%c0, %c0_0, %c0_1] : memref<4x16x256xf32, #tpu.memory_space<vmem>>, vector<4x16x256xf32>
    %1 = arith.negf %0 : vector<4x16x256xf32>
    %2 = math.exp %1 : vector<4x16x256xf32>
    %cst = arith.constant 1.000000e+00 : f32
    %3 = vector.broadcast %cst : f32 to vector<4x16x256xf32>
    %4 = arith.addf %3, %2 : vector<4x16x256xf32>
    %5 = arith.divf %3, %4 : vector<4x16x256xf32>
    %6 = vector.extract_strided_slice %0 {offsets = [0, 0, 0], sizes = [4, 8, 256], strides = [1, 1, 1]} : vector<4x16x256xf32> to vector<4x8x256xf32>
    %7 = math.exp %6 : vector<4x8x256xf32>
    %8 = tpu.iota {dimensions = array<i32: 1>} : vector<1x8x256xi32>
    %c2_i32 = arith.constant 2 : i32
    %9 = vector.broadcast %c2_i32 : i32 to vector<1x8x256xi32>
    %10 = arith.cmpi eq, %8, %9 : vector<1x8x256xi32>
    %c3_i32 = arith.constant 3 : i32
    %11 = vector.broadcast %c3_i32 : i32 to vector<1x8x256xi32>
    %12 = arith.cmpi eq, %8, %11 : vector<1x8x256xi32>
    %13 = arith.ori %10, %12 : vector<1x8x256xi1>
    %c4_i32 = arith.constant 4 : i32
    %14 = vector.broadcast %c4_i32 : i32 to vector<1x8x256xi32>
    %15 = arith.cmpi eq, %8, %14 : vector<1x8x256xi32>
    %c5_i32 = arith.constant 5 : i32
    %16 = vector.broadcast %c5_i32 : i32 to vector<1x8x256xi32>
    %17 = arith.cmpi eq, %8, %16 : vector<1x8x256xi32>
    %18 = arith.ori %15, %17 : vector<1x8x256xi1>
    %19 = vector.extract_strided_slice %5 {offsets = [0, 0, 0], sizes = [4, 8, 256], strides = [1, 1, 1]} : vector<4x16x256xf32> to vector<4x8x256xf32>
    %20 = vector.shape_cast %18 : vector<1x8x256xi1> to vector<1x8x256xi1>
    %21 = vector.broadcast %20 : vector<1x8x256xi1> to vector<4x8x256xi1>
    %22 = arith.select %21, %6, %19 : vector<4x8x256xi1>, vector<4x8x256xf32>
    %23 = vector.shape_cast %13 : vector<1x8x256xi1> to vector<1x8x256xi1>
    %24 = vector.broadcast %23 : vector<1x8x256xi1> to vector<4x8x256xi1>
    %25 = arith.select %24, %7, %22 : vector<4x8x256xi1>, vector<4x8x256xf32>
    %c0_2 = arith.constant 0 : index
    %c0_3 = arith.constant 0 : index
    %c0_4 = arith.constant 0 : index
    %26 = vector.load %arg2[%c0_2, %c0_3, %c0_4] : memref<4x8x1xf32, #tpu.memory_space<vmem>>, vector<4x8x1xf32>
    %27 = vector.broadcast %26 : vector<4x8x1xf32> to vector<4x8x256xf32>
    %28 = arith.mulf %25, %27 : vector<4x8x256xf32>
    %c0_5 = arith.constant 0 : index
    %c0_6 = arith.constant 0 : index
    %c0_7 = arith.constant 0 : index
    %29 = vector.load %arg3[%c0_5, %c0_6, %c0_7] : memref<1x8x256xf32, #tpu.memory_space<vmem>>, vector<1x8x256xf32>
    %30 = vector.broadcast %29 : vector<1x8x256xf32> to vector<4x8x256xf32>
    %31 = arith.addf %28, %30 : vector<4x8x256xf32>
    %32 = vector.extract_strided_slice %5 {offsets = [0, 0, 0], sizes = [1, 16, 256], strides = [1, 1, 1]} : vector<4x16x256xf32> to vector<1x16x256xf32>
    %33 = vector.shape_cast %32 : vector<1x16x256xf32> to vector<16x256xf32>
    %34 = tpu.transpose %33, [1, 0] : vector<16x256xf32> -> vector<256x16xf32>
    %c0_8 = arith.constant 0 : index
    %c0_9 = arith.constant 0 : index
    %c0_10 = arith.constant 0 : index
    %35 = vector.load %arg4[%c0_8, %c0_9, %c0_10] : memref<4x256x16xf32, #tpu.memory_space<vmem>>, vector<1x256x16xf32>
    %36 = vector.shape_cast %35 : vector<1x256x16xf32> to vector<256x16xf32>
    %37 = vector.shape_cast %34 : vector<256x16xf32> to vector<1x256x16xf32>
    tpu.vector_store %arg4[%c0_8, %c0_9, %c0_10], %37 {strides = array<i32>} : memref<4x256x16xf32, #tpu.memory_space<vmem>>, vector<1x256x16xf32>,
    %38 = vector.extract_strided_slice %31 {offsets = [0, 0, 0], sizes = [1, 8, 256], strides = [1, 1, 1]} : vector<4x8x256xf32> to vector<1x8x256xf32>
    %39 = vector.shape_cast %38 : vector<1x8x256xf32> to vector<8x256xf32>
    %40 = tpu.transpose %39, [1, 0] : vector<8x256xf32> -> vector<256x8xf32>
    %c0_11 = arith.constant 0 : index
    %c0_12 = arith.constant 0 : index
    %c0_13 = arith.constant 0 : index
    %41 = vector.load %arg4[%c0_11, %c0_12, %c0_13] : memref<4x256x16xf32, #tpu.memory_space<vmem>>, vector<1x256x8xf32>
    %42 = vector.shape_cast %41 : vector<1x256x8xf32> to vector<256x8xf32>
    %43 = vector.shape_cast %40 : vector<256x8xf32> to vector<1x256x8xf32>
    tpu.vector_store %arg4[%c0_11, %c0_12, %c0_13], %43 {strides = array<i32>} : memref<4x256x16xf32, #tpu.memory_space<vmem>>, vector<1x256x8xf32>,
    %44 = vector.extract_strided_slice %5 {offsets = [1, 0, 0], sizes = [1, 16, 256], strides = [1, 1, 1]} : vector<4x16x256xf32> to vector<1x16x256xf32>
    %45 = vector.shape_cast %44 : vector<1x16x256xf32> to vector<16x256xf32>
    %46 = tpu.transpose %45, [1, 0] : vector<16x256xf32> -> vector<256x16xf32>
    %c1 = arith.constant 1 : index
    %c0_14 = arith.constant 0 : index
    %c0_15 = arith.constant 0 : index
    %47 = vector.load %arg4[%c1, %c0_14, %c0_15] : memref<4x256x16xf32, #tpu.memory_space<vmem>>, vector<1x256x16xf32>
    %48 = vector.shape_cast %47 : vector<1x256x16xf32> to vector<256x16xf32>
    %49 = vector.shape_cast %46 : vector<256x16xf32> to vector<1x256x16xf32>
    tpu.vector_store %arg4[%c1, %c0_14, %c0_15], %49 {strides = array<i32>} : memref<4x256x16xf32, #tpu.memory_space<vmem>>, vector<1x256x16xf32>,
    %50 = vector.extract_strided_slice %31 {offsets = [1, 0, 0], sizes = [1, 8, 256], strides = [1, 1, 1]} : vector<4x8x256xf32> to vector<1x8x256xf32>
    %51 = vector.shape_cast %50 : vector<1x8x256xf32> to vector<8x256xf32>
    %52 = tpu.transpose %51, [1, 0] : vector<8x256xf32> -> vector<256x8xf32>
    %c1_16 = arith.constant 1 : index
    %c0_17 = arith.constant 0 : index
    %c0_18 = arith.constant 0 : index
    %53 = vector.load %arg4[%c1_16, %c0_17, %c0_18] : memref<4x256x16xf32, #tpu.memory_space<vmem>>, vector<1x256x8xf32>
    %54 = vector.shape_cast %53 : vector<1x256x8xf32> to vector<256x8xf32>
    %55 = vector.shape_cast %52 : vector<256x8xf32> to vector<1x256x8xf32>
    tpu.vector_store %arg4[%c1_16, %c0_17, %c0_18], %55 {strides = array<i32>} : memref<4x256x16xf32, #tpu.memory_space<vmem>>, vector<1x256x8xf32>,
    %56 = vector.extract_strided_slice %5 {offsets = [2, 0, 0], sizes = [1, 16, 256], strides = [1, 1, 1]} : vector<4x16x256xf32> to vector<1x16x256xf32>
    %57 = vector.shape_cast %56 : vector<1x16x256xf32> to vector<16x256xf32>
    %58 = tpu.transpose %57, [1, 0] : vector<16x256xf32> -> vector<256x16xf32>
    %c2 = arith.constant 2 : index
    %c0_19 = arith.constant 0 : index
    %c0_20 = arith.constant 0 : index
    %59 = vector.load %arg4[%c2, %c0_19, %c0_20] : memref<4x256x16xf32, #tpu.memory_space<vmem>>, vector<1x256x16xf32>
    %60 = vector.shape_cast %59 : vector<1x256x16xf32> to vector<256x16xf32>
    %61 = vector.shape_cast %58 : vector<256x16xf32> to vector<1x256x16xf32>
    tpu.vector_store %arg4[%c2, %c0_19, %c0_20], %61 {strides = array<i32>} : memref<4x256x16xf32, #tpu.memory_space<vmem>>, vector<1x256x16xf32>,
    %62 = vector.extract_strided_slice %31 {offsets = [2, 0, 0], sizes = [1, 8, 256], strides = [1, 1, 1]} : vector<4x8x256xf32> to vector<1x8x256xf32>
    %63 = vector.shape_cast %62 : vector<1x8x256xf32> to vector<8x256xf32>
    %64 = tpu.transpose %63, [1, 0] : vector<8x256xf32> -> vector<256x8xf32>
    %c2_21 = arith.constant 2 : index
    %c0_22 = arith.constant 0 : index
    %c0_23 = arith.constant 0 : index
    %65 = vector.load %arg4[%c2_21, %c0_22, %c0_23] : memref<4x256x16xf32, #tpu.memory_space<vmem>>, vector<1x256x8xf32>
    %66 = vector.shape_cast %65 : vector<1x256x8xf32> to vector<256x8xf32>
    %67 = vector.shape_cast %64 : vector<256x8xf32> to vector<1x256x8xf32>
    tpu.vector_store %arg4[%c2_21, %c0_22, %c0_23], %67 {strides = array<i32>} : memref<4x256x16xf32, #tpu.memory_space<vmem>>, vector<1x256x8xf32>,
    %68 = vector.extract_strided_slice %5 {offsets = [3, 0, 0], sizes = [1, 16, 256], strides = [1, 1, 1]} : vector<4x16x256xf32> to vector<1x16x256xf32>
    %69 = vector.shape_cast %68 : vector<1x16x256xf32> to vector<16x256xf32>
    %70 = tpu.transpose %69, [1, 0] : vector<16x256xf32> -> vector<256x16xf32>
    %c3 = arith.constant 3 : index
    %c0_24 = arith.constant 0 : index
    %c0_25 = arith.constant 0 : index
    %71 = vector.load %arg4[%c3, %c0_24, %c0_25] : memref<4x256x16xf32, #tpu.memory_space<vmem>>, vector<1x256x16xf32>
    %72 = vector.shape_cast %71 : vector<1x256x16xf32> to vector<256x16xf32>
    %73 = vector.shape_cast %70 : vector<256x16xf32> to vector<1x256x16xf32>
    tpu.vector_store %arg4[%c3, %c0_24, %c0_25], %73 {strides = array<i32>} : memref<4x256x16xf32, #tpu.memory_space<vmem>>, vector<1x256x16xf32>,
    %74 = vector.extract_strided_slice %31 {offsets = [3, 0, 0], sizes = [1, 8, 256], strides = [1, 1, 1]} : vector<4x8x256xf32> to vector<1x8x256xf32>
    %75 = vector.shape_cast %74 : vector<1x8x256xf32> to vector<8x256xf32>
    %76 = tpu.transpose %75, [1, 0] : vector<8x256xf32> -> vector<256x8xf32>
    %c3_26 = arith.constant 3 : index
    %c0_27 = arith.constant 0 : index
    %c0_28 = arith.constant 0 : index
    %77 = vector.load %arg4[%c3_26, %c0_27, %c0_28] : memref<4x256x16xf32, #tpu.memory_space<vmem>>, vector<1x256x8xf32>
    %78 = vector.shape_cast %77 : vector<1x256x8xf32> to vector<256x8xf32>
    %79 = vector.shape_cast %76 : vector<256x8xf32> to vector<1x256x8xf32>
    tpu.vector_store %arg4[%c3_26, %c0_27, %c0_28], %79 {strides = array<i32>} : memref<4x256x16xf32, #tpu.memory_space<vmem>>, vector<1x256x8xf32>,
    return
  }
  func.func @transform_0(%arg0: i32) -> (i32, i32, i32) {
    %c0_i32 = arith.constant 0 : i32
    %c0_i32_0 = arith.constant 0 : i32
    %c0_i32_1 = arith.constant 0 : i32
    return %arg0, %c0_i32, %c0_i32_0 : i32, i32, i32
  }
  func.func @transform_1(%arg0: i32) -> (i32, i32, i32) {
    %c0_i32 = arith.constant 0 : i32
    %c0_i32_0 = arith.constant 0 : i32
    %c0_i32_1 = arith.constant 0 : i32
    %c0_i32_2 = arith.constant 0 : i32
    return %c0_i32, %c0_i32_0, %c0_i32_1 : i32, i32, i32
  }
  func.func @transform_2(%arg0: i32) -> (i32, i32, i32) {
    %c0_i32 = arith.constant 0 : i32
    %c0_i32_0 = arith.constant 0 : i32
    %c0_i32_1 = arith.constant 0 : i32
    %c0_i32_2 = arith.constant 0 : i32
    return %c0_i32, %c0_i32_0, %c0_i32_1 : i32, i32, i32
  }
  func.func @transform_3(%arg0: i32) -> (i32, i32, i32) {
    %c0_i32 = arith.constant 0 : i32
    %c0_i32_0 = arith.constant 0 : i32
    %c0_i32_1 = arith.constant 0 : i32
    return %arg0, %c0_i32, %c0_i32_0 : i32, i32, i32
  }
}

</mosaic_0001>

<llo_original>
// kernel: tpu_custom_call.1
$region0: #{tpu_custom_call.1}
  #allocation0 [shape = 'u32[]', space=smem, size = 0x4, offset = 0x4, fixed_abs, tag = 'smem constant byte address 0x4 - core index']
  #allocation1 [shape = 'u32[144,128]{1,0:T(1,128)}', space=vmem, size = 0x12000, scoped, tag = 'internal scratch']
  %s0 = inlined_call_operand.hbm [shape: f32[4,16,256], index: 0, kind: input, shape index: {}]
  %s1 = inlined_call_operand.vmem [shape: f32[4,8,1], index: 1, kind: input, shape index: {}]
  %s2 = inlined_call_operand.vmem [shape: f32[1,8,256], index: 2, kind: input, shape index: {}]
  %s3 = inlined_call_operand.vmem [shape: f32[4,256,16], index: 3, kind: output, shape index: {}]
  %s4 = sld [smem:[#allocation0]]
  $region26: #{tpu_custom_call.1} parent=0
    _
  %s6 = ssub.s32 1, %s4
  %s7 = scalar_select 0, %s6, %s4
  $region1: #{tpu_custom_call.1} parent=0
    #allocation2 [shape = 'u8[65536]{0}', space=vmem, size = 0x10000, scoped, tag = 'input window, operand 0, single buffered']
    #allocation3 [shape = 's32[1]{0}', space=sflag, size = 0x4, scoped, tag = 'scoped memory for tpu_custom_call.1']
    %8 = vsyncpa [#allocation3], 0
    // Predicated region
    $region2: #{tpu_custom_call.1} parent=1 // pred_check
      _
    $region3: #{tpu_custom_call.1} parent=1 // pred_check_branch
      %10 = sbr.rel (0) target = $region5
    $region4: #{tpu_custom_call.1} parent=1 // pred_region
      %s12 = ssub.s32 2048, 2048
      %13 = vsyncadd [#allocation3], %s12
      %s14 = sshll.u32 [#allocation2], 4
      %s15 = int_to_ptr.vmem [resolvable:$true] %s14
      %20 = dma.hbm_to_vmem [thread:$0]  %s0, 2048, %s15, [#allocation3], 256, 256, 16
    $region5: #{tpu_custom_call.1} parent=1 // pred_fallthru
      _
    // Predicated region
    $region6: #{tpu_custom_call.1} parent=1 // pred_check
      _
    $region7: #{tpu_custom_call.1} parent=1 // pred_check_branch
      %22 = sbr.rel (0) target = $region9
    $region8: #{tpu_custom_call.1} parent=1 // pred_region
      _
    $region9: #{tpu_custom_call.1} parent=1 // pred_fallthru
      _
    // Predicated region
    $region10: #{tpu_custom_call.1} parent=1 // pred_check
      _
    $region11: #{tpu_custom_call.1} parent=1 // pred_check_branch
      %24 = sbr.rel (0) target = $region13
    $region12: #{tpu_custom_call.1} parent=1 // pred_region
      _
    $region13: #{tpu_custom_call.1} parent=1 // pred_fallthru
      _
    // Predicated region
    $region14: #{tpu_custom_call.1} parent=1 // pred_check
      _
    $region15: #{tpu_custom_call.1} parent=1 // pred_check_branch
      %26 = sbr.rel (0) target = $region17
    $region16: #{tpu_custom_call.1} parent=1 // pred_region
      %27 = dma.done [#allocation3], 2048
    $region17: #{tpu_custom_call.1} parent=1 // pred_fallthru
      _
    %v28 = vld [vmem:[#allocation2] sm:$0xff]
    %v29 = vld [vmem:[#allocation2 + $0x8] sm:$0xff]
    %v30 = vld [vmem:[#allocation2 + $0x10] sm:$0xff]
    %v31 = vld [vmem:[#allocation2 + $0x18] sm:$0xff]
    %v32 = vld [vmem:[#allocation2 + $0x20] sm:$0xff]
    %v33 = vld [vmem:[#allocation2 + $0x28] sm:$0xff]
    %v34 = vld [vmem:[#allocation2 + $0x30] sm:$0xff]
    %v35 = vld [vmem:[#allocation2 + $0x38] sm:$0xff]
    %v36 = vld [vmem:[#allocation2 + $0x40] sm:$0xff]
    %v37 = vld [vmem:[#allocation2 + $0x48] sm:$0xff]
    %v38 = vld [vmem:[#allocation2 + $0x50] sm:$0xff]
    %v39 = vld [vmem:[#allocation2 + $0x58] sm:$0xff]
    %v40 = vld [vmem:[#allocation2 + $0x60] sm:$0xff]
    %v41 = vld [vmem:[#allocation2 + $0x68] sm:$0xff]
    %v42 = vld [vmem:[#allocation2 + $0x70] sm:$0xff]
    %v43 = vld [vmem:[#allocation2 + $0x78] sm:$0xff]
    %v44 = vxor.u32 %v28, 2147483648
    %v45 = vxor.u32 %v29, 2147483648
    %v46 = vxor.u32 %v30, 2147483648
    %v47 = vxor.u32 %v31, 2147483648
    %v48 = vxor.u32 %v32, 2147483648
    %v49 = vxor.u32 %v33, 2147483648
    %v50 = vxor.u32 %v34, 2147483648
    %v51 = vxor.u32 %v35, 2147483648
    %v52 = vxor.u32 %v36, 2147483648
    %v53 = vxor.u32 %v37, 2147483648
    %v54 = vxor.u32 %v38, 2147483648
    %v55 = vxor.u32 %v39, 2147483648
    %v56 = vxor.u32 %v40, 2147483648
    %v57 = vxor.u32 %v41, 2147483648
    %v58 = vxor.u32 %v42, 2147483648
    %v59 = vxor.u32 %v43, 2147483648
    %v60 = vmul.f32 %v44, 1.442695
    %v61 = vpow.pop %v60
    %v62 = vmul.f32 %v45, 1.442695
    %v63 = vpow.pop %v62
    %v64 = vmul.f32 %v46, 1.442695
    %v65 = vpow.pop %v64
    %v66 = vmul.f32 %v47, 1.442695
    %v67 = vpow.pop %v66
    %v68 = vmul.f32 %v48, 1.442695
    %v69 = vpow.pop %v68
    %v70 = vmul.f32 %v49, 1.442695
    %v71 = vpow.pop %v70
    %v72 = vmul.f32 %v50, 1.442695
    %v73 = vpow.pop %v72
    %v74 = vmul.f32 %v51, 1.442695
    %v75 = vpow.pop %v74
    %v76 = vmul.f32 %v52, 1.442695
    %v77 = vpow.pop %v76
    %v78 = vmul.f32 %v53, 1.442695
    %v79 = vpow.pop %v78
    %v80 = vmul.f32 %v54, 1.442695
    %v81 = vpow.pop %v80
    %v82 = vmul.f32 %v55, 1.442695
    %v83 = vpow.pop %v82
    %v84 = vmul.f32 %v56, 1.442695
    %v85 = vpow.pop %v84
    %v86 = vmul.f32 %v57, 1.442695
    %v87 = vpow.pop %v86
    %v88 = vmul.f32 %v58, 1.442695
    %v89 = vpow.pop %v88
    %v90 = vmul.f32 %v59, 1.442695
    %v91 = vpow.pop %v90
    %v92 = vadd.f32 %v61, 1.0
    %v93 = vadd.f32 %v63, 1.0
    %v94 = vadd.f32 %v65, 1.0
    %v95 = vadd.f32 %v67, 1.0
    %v96 = vadd.f32 %v69, 1.0
    %v97 = vadd.f32 %v71, 1.0
    %v98 = vadd.f32 %v73, 1.0
    %v99 = vadd.f32 %v75, 1.0
    %v100 = vadd.f32 %v77, 1.0
    %v101 = vadd.f32 %v79, 1.0
    %v102 = vadd.f32 %v81, 1.0
    %v103 = vadd.f32 %v83, 1.0
    %v104 = vadd.f32 %v85, 1.0
    %v105 = vadd.f32 %v87, 1.0
    %v106 = vadd.f32 %v89, 1.0
    %v107 = vadd.f32 %v91, 1.0
    %v108 = vrcp.pop %v92
    %v109 = vmul.f32 1.0, %v108
    %v110 = vrcp.pop %v93
    %v111 = vmul.f32 1.0, %v110
    %v112 = vrcp.pop %v94
    %v113 = vmul.f32 1.0, %v112
    %v114 = vrcp.pop %v95
    %v115 = vmul.f32 1.0, %v114
    %v116 = vrcp.pop %v96
    %v117 = vmul.f32 1.0, %v116
    %v118 = vrcp.pop %v97
    %v119 = vmul.f32 1.0, %v118
    %v120 = vrcp.pop %v98
    %v121 = vmul.f32 1.0, %v120
    %v122 = vrcp.pop %v99
    %v123 = vmul.f32 1.0, %v122
    %v124 = vrcp.pop %v100
    %v125 = vmul.f32 1.0, %v124
    %v126 = vrcp.pop %v101
    %v127 = vmul.f32 1.0, %v126
    %v128 = vrcp.pop %v102
    %v129 = vmul.f32 1.0, %v128
    %v130 = vrcp.pop %v103
    %v131 = vmul.f32 1.0, %v130
    %v132 = vrcp.pop %v104
    %v133 = vmul.f32 1.0, %v132
    %v134 = vrcp.pop %v105
    %v135 = vmul.f32 1.0, %v134
    %v136 = vrcp.pop %v106
    %v137 = vmul.f32 1.0, %v136
    %v138 = vrcp.pop %v107
    %v139 = vmul.f32 1.0, %v138
    %v140 = vmul.f32 %v28, 1.442695
    %v141 = vpow.pop %v140
    %v142 = vmul.f32 %v29, 1.442695
    %v143 = vpow.pop %v142
    %v144 = vmul.f32 %v32, 1.442695
    %v145 = vpow.pop %v144
    %v146 = vmul.f32 %v33, 1.442695
    %v147 = vpow.pop %v146
    %v148 = vmul.f32 %v36, 1.442695
    %v149 = vpow.pop %v148
    %v150 = vmul.f32 %v37, 1.442695
    %v151 = vpow.pop %v150
    %v152 = vmul.f32 %v40, 1.442695
    %v153 = vpow.pop %v152
    %v154 = vmul.f32 %v41, 1.442695
    %v155 = vpow.pop %v154
    %v156 = vlaneseq
    %v157 = vshrl.u32 %v156, 7
    %vm158 = vcmp.eq.s32.totalorder %v157, 2
    %vm159 = vcmp.eq.s32.totalorder %v157, 3
    %vm160 = vmor %vm158, %vm159
    %vm161 = vcmp.eq.s32.totalorder %v157, 4
    %vm162 = vcmp.eq.s32.totalorder %v157, 5
    %vm163 = vmor %vm161, %vm162
    %v164 = vsel %vm163, 1, 0
    %vm165 = vcmp.eq.s32.totalorder %v164, 1
    %v166 = vsel %vm165, %v28, %v109
    %v167 = vsel %vm165, %v29, %v111
    %v168 = vsel %vm165, %v32, %v117
    %v169 = vsel %vm165, %v33, %v119
    %v170 = vsel %vm165, %v36, %v125
    %v171 = vsel %vm165, %v37, %v127
    %v172 = vsel %vm165, %v40, %v133
    %v173 = vsel %vm165, %v41, %v135
    %v174 = vsel %vm160, 1, 0
    %vm175 = vcmp.eq.s32.totalorder %v174, 1
    %v176 = vsel %vm175, %v141, %v166
    %v177 = vsel %vm175, %v143, %v167
    %v178 = vsel %vm175, %v145, %v168
    %v179 = vsel %vm175, %v147, %v169
    %v180 = vsel %vm175, %v149, %v170
    %v181 = vsel %vm175, %v151, %v171
    %v182 = vsel %vm175, %v153, %v172
    %v183 = vsel %vm175, %v155, %v173
    %v184 = vld [vmem:[%s1] sm:$0xff]
    %v185 = vld [vmem:[%s1 + $0x8] sm:$0xff]
    %v186 = vld [vmem:[%s1 + $0x10] sm:$0xff]
    %v187 = vld [vmem:[%s1 + $0x18] sm:$0xff]
    %189 = vset.pattern.permute.xlu0 0
    %190 = vperm.xlu0 %189, %v184
    %v191 = vpop.permute.xlu0 %190
    %194 = vset.pattern.permute.xlu0 0
    %195 = vperm.xlu0 %194, %v185
    %v196 = vpop.permute.xlu0 %195
    %199 = vset.pattern.permute.xlu0 0
    %200 = vperm.xlu0 %199, %v186
    %v201 = vpop.permute.xlu0 %200
    %204 = vset.pattern.permute.xlu0 0
    %205 = vperm.xlu0 %204, %v187
    %v206 = vpop.permute.xlu0 %205
    %v208 = vmul.f32 %v176, %v191
    %v209 = vmul.f32 %v177, %v191
    %v210 = vmul.f32 %v178, %v196
    %v211 = vmul.f32 %v179, %v196
    %v212 = vmul.f32 %v180, %v201
    %v213 = vmul.f32 %v181, %v201
    %v214 = vmul.f32 %v182, %v206
    %v215 = vmul.f32 %v183, %v206
    %v216 = vld [vmem:[%s2] sm:$0xff]
    %v217 = vld [vmem:[%s2 + $0x8] sm:$0xff]
    %v218 = vadd.f32 %v208, %v216
    %v219 = vadd.f32 %v209, %v217
    %v220 = vadd.f32 %v210, %v216
    %v221 = vadd.f32 %v211, %v217
    %v222 = vadd.f32 %v212, %v216
    %v223 = vadd.f32 %v213, %v217
    %v224 = vadd.f32 %v214, %v216
    %v225 = vadd.f32 %v215, %v217
    %226 = vxpose.xlu0.b32.start [1/16] %v109, 128
    %227 = vxpose.xlu0.b32.cont [2/16] %v113, 128
    %228 = vxpose.xlu0.b32.cont [3/16] 0.0, 128
    %229 = vxpose.xlu0.b32.cont [4/16] 0.0, 128
    %230 = vxpose.xlu0.b32.cont [5/16] 0.0, 128
    %231 = vxpose.xlu0.b32.cont [6/16] 0.0, 128
    %232 = vxpose.xlu0.b32.cont [7/16] 0.0, 128
    %233 = vxpose.xlu0.b32.cont [8/16] 0.0, 128
    %234 = vxpose.xlu0.b32.cont [9/16] 0.0, 128
    %235 = vxpose.xlu0.b32.cont [10/16] 0.0, 128
    %236 = vxpose.xlu0.b32.cont [11/16] 0.0, 128
    %237 = vxpose.xlu0.b32.cont [12/16] 0.0, 128
    %238 = vxpose.xlu0.b32.cont [13/16] 0.0, 128
    %239 = vxpose.xlu0.b32.cont [14/16] 0.0, 128
    %240 = vxpose.xlu0.b32.cont [15/16] 0.0, 128
    %241 = vxpose.xlu0.b32.end [16/16] 0.0, 128
    %v242 = vpop.trf.xlu0
    %v243 = vpop.trf.xlu0
    %v244 = vpop.trf.xlu0
    %v245 = vpop.trf.xlu0
    %v246 = vpop.trf.xlu0
    %v247 = vpop.trf.xlu0
    %v248 = vpop.trf.xlu0
    %v249 = vpop.trf.xlu0
    %v250 = vpop.trf.xlu0
    %v251 = vpop.trf.xlu0
    %v252 = vpop.trf.xlu0
    %v253 = vpop.trf.xlu0
    %v254 = vpop.trf.xlu0
    %v255 = vpop.trf.xlu0
    %v256 = vpop.trf.xlu0
    %v257 = vpop.trf.xlu0
    %258 = vxpose.xlu0.b32.start [1/16] %v111, 128
    %259 = vxpose.xlu0.b32.cont [2/16] %v115, 128
    %260 = vxpose.xlu0.b32.cont [3/16] 0.0, 128
    %261 = vxpose.xlu0.b32.cont [4/16] 0.0, 128
    %262 = vxpose.xlu0.b32.cont [5/16] 0.0, 128
    %263 = vxpose.xlu0.b32.cont [6/16] 0.0, 128
    %264 = vxpose.xlu0.b32.cont [7/16] 0.0, 128
    %265 = vxpose.xlu0.b32.cont [8/16] 0.0, 128
    %266 = vxpose.xlu0.b32.cont [9/16] 0.0, 128
    %267 = vxpose.xlu0.b32.cont [10/16] 0.0, 128
    %268 = vxpose.xlu0.b32.cont [11/16] 0.0, 128
    %269 = vxpose.xlu0.b32.cont [12/16] 0.0, 128
    %270 = vxpose.xlu0.b32.cont [13/16] 0.0, 128
    %271 = vxpose.xlu0.b32.cont [14/16] 0.0, 128
    %272 = vxpose.xlu0.b32.cont [15/16] 0.0, 128
    %273 = vxpose.xlu0.b32.end [16/16] 0.0, 128
    %v274 = vpop.trf.xlu0
    %v275 = vpop.trf.xlu0
    %v276 = vpop.trf.xlu0
    %v277 = vpop.trf.xlu0
    %v278 = vpop.trf.xlu0
    %v279 = vpop.trf.xlu0
    %v280 = vpop.trf.xlu0
    %v281 = vpop.trf.xlu0
    %v282 = vpop.trf.xlu0
    %v283 = vpop.trf.xlu0
    %v284 = vpop.trf.xlu0
    %v285 = vpop.trf.xlu0
    %v286 = vpop.trf.xlu0
    %v287 = vpop.trf.xlu0
    %v288 = vpop.trf.xlu0
    %v289 = vpop.trf.xlu0
    %vm290 = vcmask 130048
    %291 = vst.msk [vmem:[%s3] sm:$0xff] %vm290, %v242
    %292 = vst.msk [vmem:[%s3 + $0x8] sm:$0xff] %vm290, %v243
    %293 = vst.msk [vmem:[%s3 + $0x10] sm:$0xff] %vm290, %v244
    %294 = vst.msk [vmem:[%s3 + $0x18] sm:$0xff] %vm290, %v245
    %295 = vst.msk [vmem:[%s3 + $0x20] sm:$0xff] %vm290, %v246
    %296 = vst.msk [vmem:[%s3 + $0x28] sm:$0xff] %vm290, %v247
    %297 = vst.msk [vmem:[%s3 + $0x30] sm:$0xff] %vm290, %v248
    %298 = vst.msk [vmem:[%s3 + $0x38] sm:$0xff] %vm290, %v249
    %299 = vst.msk [vmem:[%s3 + $0x40] sm:$0xff] %vm290, %v250
    %300 = vst.msk [vmem:[%s3 + $0x48] sm:$0xff] %vm290, %v251
    %301 = vst.msk [vmem:[%s3 + $0x50] sm:$0xff] %vm290, %v252
    %302 = vst.msk [vmem:[%s3 + $0x58] sm:$0xff] %vm290, %v253
    %303 = vst.msk [vmem:[%s3 + $0x60] sm:$0xff] %vm290, %v254
    %304 = vst.msk [vmem:[%s3 + $0x68] sm:$0xff] %vm290, %v255
    %305 = vst.msk [vmem:[%s3 + $0x70] sm:$0xff] %vm290, %v256
    %306 = vst.msk [vmem:[%s3 + $0x78] sm:$0xff] %vm290, %v257
    %307 = vst.msk [vmem:[%s3 + $0x80] sm:$0xff] %vm290, %v274
    %308 = vst.msk [vmem:[%s3 + $0x88] sm:$0xff] %vm290, %v275
    %309 = vst.msk [vmem:[%s3 + $0x90] sm:$0xff] %vm290, %v276
    %310 = vst.msk [vmem:[%s3 + $0x98] sm:$0xff] %vm290, %v277
    %311 = vst.msk [vmem:[%s3 + $0xa0] sm:$0xff] %vm290, %v278
    %312 = vst.msk [vmem:[%s3 + $0xa8] sm:$0xff] %vm290, %v279
    %313 = vst.msk [vmem:[%s3 + $0xb0] sm:$0xff] %vm290, %v280
    %314 = vst.msk [vmem:[%s3 + $0xb8] sm:$0xff] %vm290, %v281
    %315 = vst.msk [vmem:[%s3 + $0xc0] sm:$0xff] %vm290, %v282
    %316 = vst.msk [vmem:[%s3 + $0xc8] sm:$0xff] %vm290, %v283
    %317 = vst.msk [vmem:[%s3 + $0xd0] sm:$0xff] %vm290, %v284
    %318 = vst.msk [vmem:[%s3 + $0xd8] sm:$0xff] %vm290, %v285
    %319 = vst.msk [vmem:[%s3 + $0xe0] sm:$0xff] %vm290, %v286
    %320 = vst.msk [vmem:[%s3 + $0xe8] sm:$0xff] %vm290, %v287
    %321 = vst.msk [vmem:[%s3 + $0xf0] sm:$0xff] %vm290, %v288
    %322 = vst.msk [vmem:[%s3 + $0xf8] sm:$0xff] %vm290, %v289
    %323 = vxpose.xlu0.b32.start [1/16] %v218, 128
    %324 = vxpose.xlu0.b32.cont [2/16] 0.0, 128
    %325 = vxpose.xlu0.b32.cont [3/16] 0.0, 128
    %326 = vxpose.xlu0.b32.cont [4/16] 0.0, 128
    %327 = vxpose.xlu0.b32.cont [5/16] 0.0, 128
    %328 = vxpose.xlu0.b32.cont [6/16] 0.0, 128
    %329 = vxpose.xlu0.b32.cont [7/16] 0.0, 128
    %330 = vxpose.xlu0.b32.cont [8/16] 0.0, 128
    %331 = vxpose.xlu0.b32.cont [9/16] 0.0, 128
    %332 = vxpose.xlu0.b32.cont [10/16] 0.0, 128
    %333 = vxpose.xlu0.b32.cont [11/16] 0.0, 128
    %334 = vxpose.xlu0.b32.cont [12/16] 0.0, 128
    %335 = vxpose.xlu0.b32.cont [13/16] 0.0, 128
    %336 = vxpose.xlu0.b32.cont [14/16] 0.0, 128
    %337 = vxpose.xlu0.b32.cont [15/16] 0.0, 128
    %338 = vxpose.xlu0.b32.end [16/16] 0.0, 128
    %v339 = vpop.trf.xlu0
    %v340 = vpop.trf.xlu0
    %v341 = vpop.trf.xlu0
    %v342 = vpop.trf.xlu0
    %v343 = vpop.trf.xlu0
    %v344 = vpop.trf.xlu0
    %v345 = vpop.trf.xlu0
    %v346 = vpop.trf.xlu0
    %v347 = vpop.trf.xlu0
    %v348 = vpop.trf.xlu0
    %v349 = vpop.trf.xlu0
    %v350 = vpop.trf.xlu0
    %v351 = vpop.trf.xlu0
    %v352 = vpop.trf.xlu0
    %v353 = vpop.trf.xlu0
    %v354 = vpop.trf.xlu0
    %355 = vxpose.xlu0.b32.start [1/16] %v219, 128
    %356 = vxpose.xlu0.b32.cont [2/16] 0.0, 128
    %357 = vxpose.xlu0.b32.cont [3/16] 0.0, 128
    %358 = vxpose.xlu0.b32.cont [4/16] 0.0, 128
    %359 = vxpose.xlu0.b32.cont [5/16] 0.0, 128
    %360 = vxpose.xlu0.b32.cont [6/16] 0.0, 128
    %361 = vxpose.xlu0.b32.cont [7/16] 0.0, 128
    %362 = vxpose.xlu0.b32.cont [8/16] 0.0, 128
    %363 = vxpose.xlu0.b32.cont [9/16] 0.0, 128
    %364 = vxpose.xlu0.b32.cont [10/16] 0.0, 128
    %365 = vxpose.xlu0.b32.cont [11/16] 0.0, 128
    %366 = vxpose.xlu0.b32.cont [12/16] 0.0, 128
    %367 = vxpose.xlu0.b32.cont [13/16] 0.0, 128
    %368 = vxpose.xlu0.b32.cont [14/16] 0.0, 128
    %369 = vxpose.xlu0.b32.cont [15/16] 0.0, 128
    %370 = vxpose.xlu0.b32.end [16/16] 0.0, 128
    %v371 = vpop.trf.xlu0
    %v372 = vpop.trf.xlu0
    %v373 = vpop.trf.xlu0
    %v374 = vpop.trf.xlu0
    %v375 = vpop.trf.xlu0
    %v376 = vpop.trf.xlu0
    %v377 = vpop.trf.xlu0
    %v378 = vpop.trf.xlu0
    %v379 = vpop.trf.xlu0
    %v380 = vpop.trf.xlu0
    %v381 = vpop.trf.xlu0
    %v382 = vpop.trf.xlu0
    %v383 = vpop.trf.xlu0
    %v384 = vpop.trf.xlu0
    %v385 = vpop.trf.xlu0
    %v386 = vpop.trf.xlu0
    %vm387 = vcmask 64512
    %388 = vst.msk [vmem:[%s3] sm:$0xff] %vm387, %v339
    %389 = vst.msk [vmem:[%s3 + $0x8] sm:$0xff] %vm387, %v340
    %390 = vst.msk [vmem:[%s3 + $0x10] sm:$0xff] %vm387, %v341
    %391 = vst.msk [vmem:[%s3 + $0x18] sm:$0xff] %vm387, %v342
    %392 = vst.msk [vmem:[%s3 + $0x20] sm:$0xff] %vm387, %v343
    %393 = vst.msk [vmem:[%s3 + $0x28] sm:$0xff] %vm387, %v344
    %394 = vst.msk [vmem:[%s3 + $0x30] sm:$0xff] %vm387, %v345
    %395 = vst.msk [vmem:[%s3 + $0x38] sm:$0xff] %vm387, %v346
    %396 = vst.msk [vmem:[%s3 + $0x40] sm:$0xff] %vm387, %v347
    %397 = vst.msk [vmem:[%s3 + $0x48] sm:$0xff] %vm387, %v348
    %398 = vst.msk [vmem:[%s3 + $0x50] sm:$0xff] %vm387, %v349
    %399 = vst.msk [vmem:[%s3 + $0x58] sm:$0xff] %vm387, %v350
    %400 = vst.msk [vmem:[%s3 + $0x60] sm:$0xff] %vm387, %v351
    %401 = vst.msk [vmem:[%s3 + $0x68] sm:$0xff] %vm387, %v352
    %402 = vst.msk [vmem:[%s3 + $0x70] sm:$0xff] %vm387, %v353
    %403 = vst.msk [vmem:[%s3 + $0x78] sm:$0xff] %vm387, %v354
    %404 = vst.msk [vmem:[%s3 + $0x80] sm:$0xff] %vm387, %v371
    %405 = vst.msk [vmem:[%s3 + $0x88] sm:$0xff] %vm387, %v372
    %406 = vst.msk [vmem:[%s3 + $0x90] sm:$0xff] %vm387, %v373
    %407 = vst.msk [vmem:[%s3 + $0x98] sm:$0xff] %vm387, %v374
    %408 = vst.msk [vmem:[%s3 + $0xa0] sm:$0xff] %vm387, %v375
    %409 = vst.msk [vmem:[%s3 + $0xa8] sm:$0xff] %vm387, %v376
    %410 = vst.msk [vmem:[%s3 + $0xb0] sm:$0xff] %vm387, %v377
    %411 = vst.msk [vmem:[%s3 + $0xb8] sm:$0xff] %vm387, %v378
    %412 = vst.msk [vmem:[%s3 + $0xc0] sm:$0xff] %vm387, %v379
    %413 = vst.msk [vmem:[%s3 + $0xc8] sm:$0xff] %vm387, %v380
    %414 = vst.msk [vmem:[%s3 + $0xd0] sm:$0xff] %vm387, %v381
    %415 = vst.msk [vmem:[%s3 + $0xd8] sm:$0xff] %vm387, %v382
    %416 = vst.msk [vmem:[%s3 + $0xe0] sm:$0xff] %vm387, %v383
    %417 = vst.msk [vmem:[%s3 + $0xe8] sm:$0xff] %vm387, %v384
    %418 = vst.msk [vmem:[%s3 + $0xf0] sm:$0xff] %vm387, %v385
    %419 = vst.msk [vmem:[%s3 + $0xf8] sm:$0xff] %vm387, %v386
    %420 = vxpose.xlu0.b32.start [1/16] %v117, 128
    %421 = vxpose.xlu0.b32.cont [2/16] %v121, 128
    %422 = vxpose.xlu0.b32.cont [3/16] 0.0, 128
    %423 = vxpose.xlu0.b32.cont [4/16] 0.0, 128
    %424 = vxpose.xlu0.b32.cont [5/16] 0.0, 128
    %425 = vxpose.xlu0.b32.cont [6/16] 0.0, 128
    %426 = vxpose.xlu0.b32.cont [7/16] 0.0, 128
    %427 = vxpose.xlu0.b32.cont [8/16] 0.0, 128
    %428 = vxpose.xlu0.b32.cont [9/16] 0.0, 128
    %429 = vxpose.xlu0.b32.cont [10/16] 0.0, 128
    %430 = vxpose.xlu0.b32.cont [11/16] 0.0, 128
    %431 = vxpose.xlu0.b32.cont [12/16] 0.0, 128
    %432 = vxpose.xlu0.b32.cont [13/16] 0.0, 128
    %433 = vxpose.xlu0.b32.cont [14/16] 0.0, 128
    %434 = vxpose.xlu0.b32.cont [15/16] 0.0, 128
    %435 = vxpose.xlu0.b32.end [16/16] 0.0, 128
    %v436 = vpop.trf.xlu0
    %v437 = vpop.trf.xlu0
    %v438 = vpop.trf.xlu0
    %v439 = vpop.trf.xlu0
    %v440 = vpop.trf.xlu0
    %v441 = vpop.trf.xlu0
    %v442 = vpop.trf.xlu0
    %v443 = vpop.trf.xlu0
    %v444 = vpop.trf.xlu0
    %v445 = vpop.trf.xlu0
    %v446 = vpop.trf.xlu0
    %v447 = vpop.trf.xlu0
    %v448 = vpop.trf.xlu0
    %v449 = vpop.trf.xlu0
    %v450 = vpop.trf.xlu0
    %v451 = vpop.trf.xlu0
    %452 = vxpose.xlu0.b32.start [1/16] %v119, 128
    %453 = vxpose.xlu0.b32.cont [2/16] %v123, 128
    %454 = vxpose.xlu0.b32.cont [3/16] 0.0, 128
    %455 = vxpose.xlu0.b32.cont [4/16] 0.0, 128
    %456 = vxpose.xlu0.b32.cont [5/16] 0.0, 128
    %457 = vxpose.xlu0.b32.cont [6/16] 0.0, 128
    %458 = vxpose.xlu0.b32.cont [7/16] 0.0, 128
    %459 = vxpose.xlu0.b32.cont [8/16] 0.0, 128
    %460 = vxpose.xlu0.b32.cont [9/16] 0.0, 128
    %461 = vxpose.xlu0.b32.cont [10/16] 0.0, 128
    %462 = vxpose.xlu0.b32.cont [11/16] 0.0, 128
    %463 = vxpose.xlu0.b32.cont [12/16] 0.0, 128
    %464 = vxpose.xlu0.b32.cont [13/16] 0.0, 128
    %465 = vxpose.xlu0.b32.cont [14/16] 0.0, 128
    %466 = vxpose.xlu0.b32.cont [15/16] 0.0, 128
    %467 = vxpose.xlu0.b32.end [16/16] 0.0, 128
    %v468 = vpop.trf.xlu0
    %v469 = vpop.trf.xlu0
    %v470 = vpop.trf.xlu0
    %v471 = vpop.trf.xlu0
    %v472 = vpop.trf.xlu0
    %v473 = vpop.trf.xlu0
    %v474 = vpop.trf.xlu0
    %v475 = vpop.trf.xlu0
    %v476 = vpop.trf.xlu0
    %v477 = vpop.trf.xlu0
    %v478 = vpop.trf.xlu0
    %v479 = vpop.trf.xlu0
    %v480 = vpop.trf.xlu0
    %v481 = vpop.trf.xlu0
    %v482 = vpop.trf.xlu0
    %v483 = vpop.trf.xlu0
    %s484 = scalar_lea.vmem %s3, 256
    %485 = vst.msk [vmem:[%s484] sm:$0xff] %vm290, %v436
    %486 = vst.msk [vmem:[%s484 + $0x8] sm:$0xff] %vm290, %v437
    %487 = vst.msk [vmem:[%s484 + $0x10] sm:$0xff] %vm290, %v438
    %488 = vst.msk [vmem:[%s484 + $0x18] sm:$0xff] %vm290, %v439
    %489 = vst.msk [vmem:[%s484 + $0x20] sm:$0xff] %vm290, %v440
    %490 = vst.msk [vmem:[%s484 + $0x28] sm:$0xff] %vm290, %v441
    %491 = vst.msk [vmem:[%s484 + $0x30] sm:$0xff] %vm290, %v442
    %492 = vst.msk [vmem:[%s484 + $0x38] sm:$0xff] %vm290, %v443
    %493 = vst.msk [vmem:[%s484 + $0x40] sm:$0xff] %vm290, %v444
    %494 = vst.msk [vmem:[%s484 + $0x48] sm:$0xff] %vm290, %v445
    %495 = vst.msk [vmem:[%s484 + $0x50] sm:$0xff] %vm290, %v446
    %496 = vst.msk [vmem:[%s484 + $0x58] sm:$0xff] %vm290, %v447
    %497 = vst.msk [vmem:[%s484 + $0x60] sm:$0xff] %vm290, %v448
    %498 = vst.msk [vmem:[%s484 + $0x68] sm:$0xff] %vm290, %v449
    %499 = vst.msk [vmem:[%s484 + $0x70] sm:$0xff] %vm290, %v450
    %500 = vst.msk [vmem:[%s484 + $0x78] sm:$0xff] %vm290, %v451
    %501 = vst.msk [vmem:[%s484 + $0x80] sm:$0xff] %vm290, %v468
    %502 = vst.msk [vmem:[%s484 + $0x88] sm:$0xff] %vm290, %v469
    %503 = vst.msk [vmem:[%s484 + $0x90] sm:$0xff] %vm290, %v470
    %504 = vst.msk [vmem:[%s484 + $0x98] sm:$0xff] %vm290, %v471
    %505 = vst.msk [vmem:[%s484 + $0xa0] sm:$0xff] %vm290, %v472
    %506 = vst.msk [vmem:[%s484 + $0xa8] sm:$0xff] %vm290, %v473
    %507 = vst.msk [vmem:[%s484 + $0xb0] sm:$0xff] %vm290, %v474
    %508 = vst.msk [vmem:[%s484 + $0xb8] sm:$0xff] %vm290, %v475
    %509 = vst.msk [vmem:[%s484 + $0xc0] sm:$0xff] %vm290, %v476
    %510 = vst.msk [vmem:[%s484 + $0xc8] sm:$0xff] %vm290, %v477
    %511 = vst.msk [vmem:[%s484 + $0xd0] sm:$0xff] %vm290, %v478
    %512 = vst.msk [vmem:[%s484 + $0xd8] sm:$0xff] %vm290, %v479
    %513 = vst.msk [vmem:[%s484 + $0xe0] sm:$0xff] %vm290, %v480
    %514 = vst.msk [vmem:[%s484 + $0xe8] sm:$0xff] %vm290, %v481
    %515 = vst.msk [vmem:[%s484 + $0xf0] sm:$0xff] %vm290, %v482
    %516 = vst.msk [vmem:[%s484 + $0xf8] sm:$0xff] %vm290, %v483
    %517 = vxpose.xlu0.b32.start [1/16] %v220, 128
    %518 = vxpose.xlu0.b32.cont [2/16] 0.0, 128
    %519 = vxpose.xlu0.b32.cont [3/16] 0.0, 128
    %520 = vxpose.xlu0.b32.cont [4/16] 0.0, 128
    %521 = vxpose.xlu0.b32.cont [5/16] 0.0, 128
    %522 = vxpose.xlu0.b32.cont [6/16] 0.0, 128
    %523 = vxpose.xlu0.b32.cont [7/16] 0.0, 128
    %524 = vxpose.xlu0.b32.cont [8/16] 0.0, 128
    %525 = vxpose.xlu0.b32.cont [9/16] 0.0, 128
    %526 = vxpose.xlu0.b32.cont [10/16] 0.0, 128
    %527 = vxpose.xlu0.b32.cont [11/16] 0.0, 128
    %528 = vxpose.xlu0.b32.cont [12/16] 0.0, 128
    %529 = vxpose.xlu0.b32.cont [13/16] 0.0, 128
    %530 = vxpose.xlu0.b32.cont [14/16] 0.0, 128
    %531 = vxpose.xlu0.b32.cont [15/16] 0.0, 128
    %532 = vxpose.xlu0.b32.end [16/16] 0.0, 128
    %v533 = vpop.trf.xlu0
    %v534 = vpop.trf.xlu0
    %v535 = vpop.trf.xlu0
    %v536 = vpop.trf.xlu0
    %v537 = vpop.trf.xlu0
    %v538 = vpop.trf.xlu0
    %v539 = vpop.trf.xlu0
    %v540 = vpop.trf.xlu0
    %v541 = vpop.trf.xlu0
    %v542 = vpop.trf.xlu0
    %v543 = vpop.trf.xlu0
    %v544 = vpop.trf.xlu0
    %v545 = vpop.trf.xlu0
    %v546 = vpop.trf.xlu0
    %v547 = vpop.trf.xlu0
    %v548 = vpop.trf.xlu0
    %549 = vxpose.xlu0.b32.start [1/16] %v221, 128
    %550 = vxpose.xlu0.b32.cont [2/16] 0.0, 128
    %551 = vxpose.xlu0.b32.cont [3/16] 0.0, 128
    %552 = vxpose.xlu0.b32.cont [4/16] 0.0, 128
    %553 = vxpose.xlu0.b32.cont [5/16] 0.0, 128
    %554 = vxpose.xlu0.b32.cont [6/16] 0.0, 128
    %555 = vxpose.xlu0.b32.cont [7/16] 0.0, 128
    %556 = vxpose.xlu0.b32.cont [8/16] 0.0, 128
    %557 = vxpose.xlu0.b32.cont [9/16] 0.0, 128
    %558 = vxpose.xlu0.b32.cont [10/16] 0.0, 128
    %559 = vxpose.xlu0.b32.cont [11/16] 0.0, 128
    %560 = vxpose.xlu0.b32.cont [12/16] 0.0, 128
    %561 = vxpose.xlu0.b32.cont [13/16] 0.0, 128
    %562 = vxpose.xlu0.b32.cont [14/16] 0.0, 128
    %563 = vxpose.xlu0.b32.cont [15/16] 0.0, 128
    %564 = vxpose.xlu0.b32.end [16/16] 0.0, 128
    %v565 = vpop.trf.xlu0
    %v566 = vpop.trf.xlu0
    %v567 = vpop.trf.xlu0
    %v568 = vpop.trf.xlu0
    %v569 = vpop.trf.xlu0
    %v570 = vpop.trf.xlu0
    %v571 = vpop.trf.xlu0
    %v572 = vpop.trf.xlu0
    %v573 = vpop.trf.xlu0
    %v574 = vpop.trf.xlu0
    %v575 = vpop.trf.xlu0
    %v576 = vpop.trf.xlu0
    %v577 = vpop.trf.xlu0
    %v578 = vpop.trf.xlu0
    %v579 = vpop.trf.xlu0
    %v580 = vpop.trf.xlu0
    %581 = vst.msk [vmem:[%s484] sm:$0xff] %vm387, %v533
    %582 = vst.msk [vmem:[%s484 + $0x8] sm:$0xff] %vm387, %v534
    %583 = vst.msk [vmem:[%s484 + $0x10] sm:$0xff] %vm387, %v535
    %584 = vst.msk [vmem:[%s484 + $0x18] sm:$0xff] %vm387, %v536
    %585 = vst.msk [vmem:[%s484 + $0x20] sm:$0xff] %vm387, %v537
    %586 = vst.msk [vmem:[%s484 + $0x28] sm:$0xff] %vm387, %v538
    %587 = vst.msk [vmem:[%s484 + $0x30] sm:$0xff] %vm387, %v539
    %588 = vst.msk [vmem:[%s484 + $0x38] sm:$0xff] %vm387, %v540
    %589 = vst.msk [vmem:[%s484 + $0x40] sm:$0xff] %vm387, %v541
    %590 = vst.msk [vmem:[%s484 + $0x48] sm:$0xff] %vm387, %v542
    %591 = vst.msk [vmem:[%s484 + $0x50] sm:$0xff] %vm387, %v543
    %592 = vst.msk [vmem:[%s484 + $0x58] sm:$0xff] %vm387, %v544
    %593 = vst.msk [vmem:[%s484 + $0x60] sm:$0xff] %vm387, %v545
    %594 = vst.msk [vmem:[%s484 + $0x68] sm:$0xff] %vm387, %v546
    %595 = vst.msk [vmem:[%s484 + $0x70] sm:$0xff] %vm387, %v547
    %596 = vst.msk [vmem:[%s484 + $0x78] sm:$0xff] %vm387, %v548
    %597 = vst.msk [vmem:[%s484 + $0x80] sm:$0xff] %vm387, %v565
    %598 = vst.msk [vmem:[%s484 + $0x88] sm:$0xff] %vm387, %v566
    %599 = vst.msk [vmem:[%s484 + $0x90] sm:$0xff] %vm387, %v567
    %600 = vst.msk [vmem:[%s484 + $0x98] sm:$0xff] %vm387, %v568
    %601 = vst.msk [vmem:[%s484 + $0xa0] sm:$0xff] %vm387, %v569
    %602 = vst.msk [vmem:[%s484 + $0xa8] sm:$0xff] %vm387, %v570
    %603 = vst.msk [vmem:[%s484 + $0xb0] sm:$0xff] %vm387, %v571
    %604 = vst.msk [vmem:[%s484 + $0xb8] sm:$0xff] %vm387, %v572
    %605 = vst.msk [vmem:[%s484 + $0xc0] sm:$0xff] %vm387, %v573
    %606 = vst.msk [vmem:[%s484 + $0xc8] sm:$0xff] %vm387, %v574
    %607 = vst.msk [vmem:[%s484 + $0xd0] sm:$0xff] %vm387, %v575
    %608 = vst.msk [vmem:[%s484 + $0xd8] sm:$0xff] %vm387, %v576
    %609 = vst.msk [vmem:[%s484 + $0xe0] sm:$0xff] %vm387, %v577
    %610 = vst.msk [vmem:[%s484 + $0xe8] sm:$0xff] %vm387, %v578
    %611 = vst.msk [vmem:[%s484 + $0xf0] sm:$0xff] %vm387, %v579
    %612 = vst.msk [vmem:[%s484 + $0xf8] sm:$0xff] %vm387, %v580
    %613 = vxpose.xlu0.b32.start [1/16] %v125, 128
    %614 = vxpose.xlu0.b32.cont [2/16] %v129, 128
    %615 = vxpose.xlu0.b32.cont [3/16] 0.0, 128
    %616 = vxpose.xlu0.b32.cont [4/16] 0.0, 128
    %617 = vxpose.xlu0.b32.cont [5/16] 0.0, 128
    %618 = vxpose.xlu0.b32.cont [6/16] 0.0, 128
    %619 = vxpose.xlu0.b32.cont [7/16] 0.0, 128
    %620 = vxpose.xlu0.b32.cont [8/16] 0.0, 128
    %621 = vxpose.xlu0.b32.cont [9/16] 0.0, 128
    %622 = vxpose.xlu0.b32.cont [10/16] 0.0, 128
    %623 = vxpose.xlu0.b32.cont [11/16] 0.0, 128
    %624 = vxpose.xlu0.b32.cont [12/16] 0.0, 128
    %625 = vxpose.xlu0.b32.cont [13/16] 0.0, 128
    %626 = vxpose.xlu0.b32.cont [14/16] 0.0, 128
    %627 = vxpose.xlu0.b32.cont [15/16] 0.0, 128
    %628 = vxpose.xlu0.b32.end [16/16] 0.0, 128
    %v629 = vpop.trf.xlu0
    %v630 = vpop.trf.xlu0
    %v631 = vpop.trf.xlu0
    %v632 = vpop.trf.xlu0
    %v633 = vpop.trf.xlu0
    %v634 = vpop.trf.xlu0
    %v635 = vpop.trf.xlu0
    %v636 = vpop.trf.xlu0
    %v637 = vpop.trf.xlu0
    %v638 = vpop.trf.xlu0
    %v639 = vpop.trf.xlu0
    %v640 = vpop.trf.xlu0
    %v641 = vpop.trf.xlu0
    %v642 = vpop.trf.xlu0
    %v643 = vpop.trf.xlu0
    %v644 = vpop.trf.xlu0
    %645 = vxpose.xlu0.b32.start [1/16] %v127, 128
    %646 = vxpose.xlu0.b32.cont [2/16] %v131, 128
    %647 = vxpose.xlu0.b32.cont [3/16] 0.0, 128
    %648 = vxpose.xlu0.b32.cont [4/16] 0.0, 128
    %649 = vxpose.xlu0.b32.cont [5/16] 0.0, 128
    %650 = vxpose.xlu0.b32.cont [6/16] 0.0, 128
    %651 = vxpose.xlu0.b32.cont [7/16] 0.0, 128
    %652 = vxpose.xlu0.b32.cont [8/16] 0.0, 128
    %653 = vxpose.xlu0.b32.cont [9/16] 0.0, 128
    %654 = vxpose.xlu0.b32.cont [10/16] 0.0, 128
    %655 = vxpose.xlu0.b32.cont [11/16] 0.0, 128
    %656 = vxpose.xlu0.b32.cont [12/16] 0.0, 128
    %657 = vxpose.xlu0.b32.cont [13/16] 0.0, 128
    %658 = vxpose.xlu0.b32.cont [14/16] 0.0, 128
    %659 = vxpose.xlu0.b32.cont [15/16] 0.0, 128
    %660 = vxpose.xlu0.b32.end [16/16] 0.0, 128
    %v661 = vpop.trf.xlu0
    %v662 = vpop.trf.xlu0
    %v663 = vpop.trf.xlu0
    %v664 = vpop.trf.xlu0
    %v665 = vpop.trf.xlu0
    %v666 = vpop.trf.xlu0
    %v667 = vpop.trf.xlu0
    %v668 = vpop.trf.xlu0
    %v669 = vpop.trf.xlu0
    %v670 = vpop.trf.xlu0
    %v671 = vpop.trf.xlu0
    %v672 = vpop.trf.xlu0
    %v673 = vpop.trf.xlu0
    %v674 = vpop.trf.xlu0
    %v675 = vpop.trf.xlu0
    %v676 = vpop.trf.xlu0
    %s677 = scalar_lea.vmem %s3, 512
    %678 = vst.msk [vmem:[%s677] sm:$0xff] %vm290, %v629
    %679 = vst.msk [vmem:[%s677 + $0x8] sm:$0xff] %vm290, %v630
    %680 = vst.msk [vmem:[%s677 + $0x10] sm:$0xff] %vm290, %v631
    %681 = vst.msk [vmem:[%s677 + $0x18] sm:$0xff] %vm290, %v632
    %682 = vst.msk [vmem:[%s677 + $0x20] sm:$0xff] %vm290, %v633
    %683 = vst.msk [vmem:[%s677 + $0x28] sm:$0xff] %vm290, %v634
    %684 = vst.msk [vmem:[%s677 + $0x30] sm:$0xff] %vm290, %v635
    %685 = vst.msk [vmem:[%s677 + $0x38] sm:$0xff] %vm290, %v636
    %686 = vst.msk [vmem:[%s677 + $0x40] sm:$0xff] %vm290, %v637
    %687 = vst.msk [vmem:[%s677 + $0x48] sm:$0xff] %vm290, %v638
    %688 = vst.msk [vmem:[%s677 + $0x50] sm:$0xff] %vm290, %v639
    %689 = vst.msk [vmem:[%s677 + $0x58] sm:$0xff] %vm290, %v640
    %690 = vst.msk [vmem:[%s677 + $0x60] sm:$0xff] %vm290, %v641
    %691 = vst.msk [vmem:[%s677 + $0x68] sm:$0xff] %vm290, %v642
    %692 = vst.msk [vmem:[%s677 + $0x70] sm:$0xff] %vm290, %v643
    %693 = vst.msk [vmem:[%s677 + $0x78] sm:$0xff] %vm290, %v644
    %694 = vst.msk [vmem:[%s677 + $0x80] sm:$0xff] %vm290, %v661
    %695 = vst.msk [vmem:[%s677 + $0x88] sm:$0xff] %vm290, %v662
    %696 = vst.msk [vmem:[%s677 + $0x90] sm:$0xff] %vm290, %v663
    %697 = vst.msk [vmem:[%s677 + $0x98] sm:$0xff] %vm290, %v664
    %698 = vst.msk [vmem:[%s677 + $0xa0] sm:$0xff] %vm290, %v665
    %699 = vst.msk [vmem:[%s677 + $0xa8] sm:$0xff] %vm290, %v666
    %700 = vst.msk [vmem:[%s677 + $0xb0] sm:$0xff] %vm290, %v667
    %701 = vst.msk [vmem:[%s677 + $0xb8] sm:$0xff] %vm290, %v668
    %702 = vst.msk [vmem:[%s677 + $0xc0] sm:$0xff] %vm290, %v669
    %703 = vst.msk [vmem:[%s677 + $0xc8] sm:$0xff] %vm290, %v670
    %704 = vst.msk [vmem:[%s677 + $0xd0] sm:$0xff] %vm290, %v671
    %705 = vst.msk [vmem:[%s677 + $0xd8] sm:$0xff] %vm290, %v672
    %706 = vst.msk [vmem:[%s677 + $0xe0] sm:$0xff] %vm290, %v673
    %707 = vst.msk [vmem:[%s677 + $0xe8] sm:$0xff] %vm290, %v674
    %708 = vst.msk [vmem:[%s677 + $0xf0] sm:$0xff] %vm290, %v675
    %709 = vst.msk [vmem:[%s677 + $0xf8] sm:$0xff] %vm290, %v676
    %710 = vxpose.xlu0.b32.start [1/16] %v222, 128
    %711 = vxpose.xlu0.b32.cont [2/16] 0.0, 128
    %712 = vxpose.xlu0.b32.cont [3/16] 0.0, 128
    %713 = vxpose.xlu0.b32.cont [4/16] 0.0, 128
    %714 = vxpose.xlu0.b32.cont [5/16] 0.0, 128
    %715 = vxpose.xlu0.b32.cont [6/16] 0.0, 128
    %716 = vxpose.xlu0.b32.cont [7/16] 0.0, 128
    %717 = vxpose.xlu0.b32.cont [8/16] 0.0, 128
    %718 = vxpose.xlu0.b32.cont [9/16] 0.0, 128
    %719 = vxpose.xlu0.b32.cont [10/16] 0.0, 128
    %720 = vxpose.xlu0.b32.cont [11/16] 0.0, 128
    %721 = vxpose.xlu0.b32.cont [12/16] 0.0, 128
    %722 = vxpose.xlu0.b32.cont [13/16] 0.0, 128
    %723 = vxpose.xlu0.b32.cont [14/16] 0.0, 128
    %724 = vxpose.xlu0.b32.cont [15/16] 0.0, 128
    %725 = vxpose.xlu0.b32.end [16/16] 0.0, 128
    %v726 = vpop.trf.xlu0
    %v727 = vpop.trf.xlu0
    %v728 = vpop.trf.xlu0
    %v729 = vpop.trf.xlu0
    %v730 = vpop.trf.xlu0
    %v731 = vpop.trf.xlu0
    %v732 = vpop.trf.xlu0
    %v733 = vpop.trf.xlu0
    %v734 = vpop.trf.xlu0
    %v735 = vpop.trf.xlu0
    %v736 = vpop.trf.xlu0
    %v737 = vpop.trf.xlu0
    %v738 = vpop.trf.xlu0
    %v739 = vpop.trf.xlu0
    %v740 = vpop.trf.xlu0
    %v741 = vpop.trf.xlu0
    %742 = vxpose.xlu0.b32.start [1/16] %v223, 128
    %743 = vxpose.xlu0.b32.cont [2/16] 0.0, 128
    %744 = vxpose.xlu0.b32.cont [3/16] 0.0, 128
    %745 = vxpose.xlu0.b32.cont [4/16] 0.0, 128
    %746 = vxpose.xlu0.b32.cont [5/16] 0.0, 128
    %747 = vxpose.xlu0.b32.cont [6/16] 0.0, 128
    %748 = vxpose.xlu0.b32.cont [7/16] 0.0, 128
    %749 = vxpose.xlu0.b32.cont [8/16] 0.0, 128
    %750 = vxpose.xlu0.b32.cont [9/16] 0.0, 128
    %751 = vxpose.xlu0.b32.cont [10/16] 0.0, 128
    %752 = vxpose.xlu0.b32.cont [11/16] 0.0, 128
    %753 = vxpose.xlu0.b32.cont [12/16] 0.0, 128
    %754 = vxpose.xlu0.b32.cont [13/16] 0.0, 128
    %755 = vxpose.xlu0.b32.cont [14/16] 0.0, 128
    %756 = vxpose.xlu0.b32.cont [15/16] 0.0, 128
    %757 = vxpose.xlu0.b32.end [16/16] 0.0, 128
    %v758 = vpop.trf.xlu0
    %v759 = vpop.trf.xlu0
    %v760 = vpop.trf.xlu0
    %v761 = vpop.trf.xlu0
    %v762 = vpop.trf.xlu0
    %v763 = vpop.trf.xlu0
    %v764 = vpop.trf.xlu0
    %v765 = vpop.trf.xlu0
    %v766 = vpop.trf.xlu0
    %v767 = vpop.trf.xlu0
    %v768 = vpop.trf.xlu0
    %v769 = vpop.trf.xlu0
    %v770 = vpop.trf.xlu0
    %v771 = vpop.trf.xlu0
    %v772 = vpop.trf.xlu0
    %v773 = vpop.trf.xlu0
    %774 = vst.msk [vmem:[%s677] sm:$0xff] %vm387, %v726
    %775 = vst.msk [vmem:[%s677 + $0x8] sm:$0xff] %vm387, %v727
    %776 = vst.msk [vmem:[%s677 + $0x10] sm:$0xff] %vm387, %v728
    %777 = vst.msk [vmem:[%s677 + $0x18] sm:$0xff] %vm387, %v729
    %778 = vst.msk [vmem:[%s677 + $0x20] sm:$0xff] %vm387, %v730
    %779 = vst.msk [vmem:[%s677 + $0x28] sm:$0xff] %vm387, %v731
    %780 = vst.msk [vmem:[%s677 + $0x30] sm:$0xff] %vm387, %v732
    %781 = vst.msk [vmem:[%s677 + $0x38] sm:$0xff] %vm387, %v733
    %782 = vst.msk [vmem:[%s677 + $0x40] sm:$0xff] %vm387, %v734
    %783 = vst.msk [vmem:[%s677 + $0x48] sm:$0xff] %vm387, %v735
    %784 = vst.msk [vmem:[%s677 + $0x50] sm:$0xff] %vm387, %v736
    %785 = vst.msk [vmem:[%s677 + $0x58] sm:$0xff] %vm387, %v737
    %786 = vst.msk [vmem:[%s677 + $0x60] sm:$0xff] %vm387, %v738
    %787 = vst.msk [vmem:[%s677 + $0x68] sm:$0xff] %vm387, %v739
    %788 = vst.msk [vmem:[%s677 + $0x70] sm:$0xff] %vm387, %v740
    %789 = vst.msk [vmem:[%s677 + $0x78] sm:$0xff] %vm387, %v741
    %790 = vst.msk [vmem:[%s677 + $0x80] sm:$0xff] %vm387, %v758
    %791 = vst.msk [vmem:[%s677 + $0x88] sm:$0xff] %vm387, %v759
    %792 = vst.msk [vmem:[%s677 + $0x90] sm:$0xff] %vm387, %v760
    %793 = vst.msk [vmem:[%s677 + $0x98] sm:$0xff] %vm387, %v761
    %794 = vst.msk [vmem:[%s677 + $0xa0] sm:$0xff] %vm387, %v762
    %795 = vst.msk [vmem:[%s677 + $0xa8] sm:$0xff] %vm387, %v763
    %796 = vst.msk [vmem:[%s677 + $0xb0] sm:$0xff] %vm387, %v764
    %797 = vst.msk [vmem:[%s677 + $0xb8] sm:$0xff] %vm387, %v765
    %798 = vst.msk [vmem:[%s677 + $0xc0] sm:$0xff] %vm387, %v766
    %799 = vst.msk [vmem:[%s677 + $0xc8] sm:$0xff] %vm387, %v767
    %800 = vst.msk [vmem:[%s677 + $0xd0] sm:$0xff] %vm387, %v768
    %801 = vst.msk [vmem:[%s677 + $0xd8] sm:$0xff] %vm387, %v769
    %802 = vst.msk [vmem:[%s677 + $0xe0] sm:$0xff] %vm387, %v770
    %803 = vst.msk [vmem:[%s677 + $0xe8] sm:$0xff] %vm387, %v771
    %804 = vst.msk [vmem:[%s677 + $0xf0] sm:$0xff] %vm387, %v772
    %805 = vst.msk [vmem:[%s677 + $0xf8] sm:$0xff] %vm387, %v773
    %806 = vxpose.xlu0.b32.start [1/16] %v133, 128
    %807 = vxpose.xlu0.b32.cont [2/16] %v137, 128
    %808 = vxpose.xlu0.b32.cont [3/16] 0.0, 128
    %809 = vxpose.xlu0.b32.cont [4/16] 0.0, 128
    %810 = vxpose.xlu0.b32.cont [5/16] 0.0, 128
    %811 = vxpose.xlu0.b32.cont [6/16] 0.0, 128
    %812 = vxpose.xlu0.b32.cont [7/16] 0.0, 128
    %813 = vxpose.xlu0.b32.cont [8/16] 0.0, 128
    %814 = vxpose.xlu0.b32.cont [9/16] 0.0, 128
    %815 = vxpose.xlu0.b32.cont [10/16] 0.0, 128
    %816 = vxpose.xlu0.b32.cont [11/16] 0.0, 128
    %817 = vxpose.xlu0.b32.cont [12/16] 0.0, 128
    %818 = vxpose.xlu0.b32.cont [13/16] 0.0, 128
    %819 = vxpose.xlu0.b32.cont [14/16] 0.0, 128
    %820 = vxpose.xlu0.b32.cont [15/16] 0.0, 128
    %821 = vxpose.xlu0.b32.end [16/16] 0.0, 128
    %v822 = vpop.trf.xlu0
    %v823 = vpop.trf.xlu0
    %v824 = vpop.trf.xlu0
    %v825 = vpop.trf.xlu0
    %v826 = vpop.trf.xlu0
    %v827 = vpop.trf.xlu0
    %v828 = vpop.trf.xlu0
    %v829 = vpop.trf.xlu0
    %v830 = vpop.trf.xlu0
    %v831 = vpop.trf.xlu0
    %v832 = vpop.trf.xlu0
    %v833 = vpop.trf.xlu0
    %v834 = vpop.trf.xlu0
    %v835 = vpop.trf.xlu0
    %v836 = vpop.trf.xlu0
    %v837 = vpop.trf.xlu0
    %838 = vxpose.xlu0.b32.start [1/16] %v135, 128
    %839 = vxpose.xlu0.b32.cont [2/16] %v139, 128
    %840 = vxpose.xlu0.b32.cont [3/16] 0.0, 128
    %841 = vxpose.xlu0.b32.cont [4/16] 0.0, 128
    %842 = vxpose.xlu0.b32.cont [5/16] 0.0, 128
    %843 = vxpose.xlu0.b32.cont [6/16] 0.0, 128
    %844 = vxpose.xlu0.b32.cont [7/16] 0.0, 128
    %845 = vxpose.xlu0.b32.cont [8/16] 0.0, 128
    %846 = vxpose.xlu0.b32.cont [9/16] 0.0, 128
    %847 = vxpose.xlu0.b32.cont [10/16] 0.0, 128
    %848 = vxpose.xlu0.b32.cont [11/16] 0.0, 128
    %849 = vxpose.xlu0.b32.cont [12/16] 0.0, 128
    %850 = vxpose.xlu0.b32.cont [13/16] 0.0, 128
    %851 = vxpose.xlu0.b32.cont [14/16] 0.0, 128
    %852 = vxpose.xlu0.b32.cont [15/16] 0.0, 128
    %853 = vxpose.xlu0.b32.end [16/16] 0.0, 128
    %v854 = vpop.trf.xlu0
    %v855 = vpop.trf.xlu0
    %v856 = vpop.trf.xlu0
    %v857 = vpop.trf.xlu0
    %v858 = vpop.trf.xlu0
    %v859 = vpop.trf.xlu0
    %v860 = vpop.trf.xlu0
    %v861 = vpop.trf.xlu0
    %v862 = vpop.trf.xlu0
    %v863 = vpop.trf.xlu0
    %v864 = vpop.trf.xlu0
    %v865 = vpop.trf.xlu0
    %v866 = vpop.trf.xlu0
    %v867 = vpop.trf.xlu0
    %v868 = vpop.trf.xlu0
    %v869 = vpop.trf.xlu0
    %s870 = scalar_lea.vmem %s3, 768
    %871 = vst.msk [vmem:[%s870] sm:$0xff] %vm290, %v822
    %872 = vst.msk [vmem:[%s870 + $0x8] sm:$0xff] %vm290, %v823
    %873 = vst.msk [vmem:[%s870 + $0x10] sm:$0xff] %vm290, %v824
    %874 = vst.msk [vmem:[%s870 + $0x18] sm:$0xff] %vm290, %v825
    %875 = vst.msk [vmem:[%s870 + $0x20] sm:$0xff] %vm290, %v826
    %876 = vst.msk [vmem:[%s870 + $0x28] sm:$0xff] %vm290, %v827
    %877 = vst.msk [vmem:[%s870 + $0x30] sm:$0xff] %vm290, %v828
    %878 = vst.msk [vmem:[%s870 + $0x38] sm:$0xff] %vm290, %v829
    %879 = vst.msk [vmem:[%s870 + $0x40] sm:$0xff] %vm290, %v830
    %880 = vst.msk [vmem:[%s870 + $0x48] sm:$0xff] %vm290, %v831
    %881 = vst.msk [vmem:[%s870 + $0x50] sm:$0xff] %vm290, %v832
    %882 = vst.msk [vmem:[%s870 + $0x58] sm:$0xff] %vm290, %v833
    %883 = vst.msk [vmem:[%s870 + $0x60] sm:$0xff] %vm290, %v834
    %884 = vst.msk [vmem:[%s870 + $0x68] sm:$0xff] %vm290, %v835
    %885 = vst.msk [vmem:[%s870 + $0x70] sm:$0xff] %vm290, %v836
    %886 = vst.msk [vmem:[%s870 + $0x78] sm:$0xff] %vm290, %v837
    %887 = vst.msk [vmem:[%s870 + $0x80] sm:$0xff] %vm290, %v854
    %888 = vst.msk [vmem:[%s870 + $0x88] sm:$0xff] %vm290, %v855
    %889 = vst.msk [vmem:[%s870 + $0x90] sm:$0xff] %vm290, %v856
    %890 = vst.msk [vmem:[%s870 + $0x98] sm:$0xff] %vm290, %v857
    %891 = vst.msk [vmem:[%s870 + $0xa0] sm:$0xff] %vm290, %v858
    %892 = vst.msk [vmem:[%s870 + $0xa8] sm:$0xff] %vm290, %v859
    %893 = vst.msk [vmem:[%s870 + $0xb0] sm:$0xff] %vm290, %v860
    %894 = vst.msk [vmem:[%s870 + $0xb8] sm:$0xff] %vm290, %v861
    %895 = vst.msk [vmem:[%s870 + $0xc0] sm:$0xff] %vm290, %v862
    %896 = vst.msk [vmem:[%s870 + $0xc8] sm:$0xff] %vm290, %v863
    %897 = vst.msk [vmem:[%s870 + $0xd0] sm:$0xff] %vm290, %v864
    %898 = vst.msk [vmem:[%s870 + $0xd8] sm:$0xff] %vm290, %v865
    %899 = vst.msk [vmem:[%s870 + $0xe0] sm:$0xff] %vm290, %v866
    %900 = vst.msk [vmem:[%s870 + $0xe8] sm:$0xff] %vm290, %v867
    %901 = vst.msk [vmem:[%s870 + $0xf0] sm:$0xff] %vm290, %v868
    %902 = vst.msk [vmem:[%s870 + $0xf8] sm:$0xff] %vm290, %v869
    %903 = vxpose.xlu0.b32.start [1/16] %v224, 128
    %904 = vxpose.xlu0.b32.cont [2/16] 0.0, 128
    %905 = vxpose.xlu0.b32.cont [3/16] 0.0, 128
    %906 = vxpose.xlu0.b32.cont [4/16] 0.0, 128
    %907 = vxpose.xlu0.b32.cont [5/16] 0.0, 128
    %908 = vxpose.xlu0.b32.cont [6/16] 0.0, 128
    %909 = vxpose.xlu0.b32.cont [7/16] 0.0, 128
    %910 = vxpose.xlu0.b32.cont [8/16] 0.0, 128
    %911 = vxpose.xlu0.b32.cont [9/16] 0.0, 128
    %912 = vxpose.xlu0.b32.cont [10/16] 0.0, 128
    %913 = vxpose.xlu0.b32.cont [11/16] 0.0, 128
    %914 = vxpose.xlu0.b32.cont [12/16] 0.0, 128
    %915 = vxpose.xlu0.b32.cont [13/16] 0.0, 128
    %916 = vxpose.xlu0.b32.cont [14/16] 0.0, 128
    %917 = vxpose.xlu0.b32.cont [15/16] 0.0, 128
    %918 = vxpose.xlu0.b32.end [16/16] 0.0, 128
    %v919 = vpop.trf.xlu0
    %v920 = vpop.trf.xlu0
    %v921 = vpop.trf.xlu0
    %v922 = vpop.trf.xlu0
    %v923 = vpop.trf.xlu0
    %v924 = vpop.trf.xlu0
    %v925 = vpop.trf.xlu0
    %v926 = vpop.trf.xlu0
    %v927 = vpop.trf.xlu0
    %v928 = vpop.trf.xlu0
    %v929 = vpop.trf.xlu0
    %v930 = vpop.trf.xlu0
    %v931 = vpop.trf.xlu0
    %v932 = vpop.trf.xlu0
    %v933 = vpop.trf.xlu0
    %v934 = vpop.trf.xlu0
    %935 = vxpose.xlu0.b32.start [1/16] %v225, 128
    %936 = vxpose.xlu0.b32.cont [2/16] 0.0, 128
    %937 = vxpose.xlu0.b32.cont [3/16] 0.0, 128
    %938 = vxpose.xlu0.b32.cont [4/16] 0.0, 128
    %939 = vxpose.xlu0.b32.cont [5/16] 0.0, 128
    %940 = vxpose.xlu0.b32.cont [6/16] 0.0, 128
    %941 = vxpose.xlu0.b32.cont [7/16] 0.0, 128
    %942 = vxpose.xlu0.b32.cont [8/16] 0.0, 128
    %943 = vxpose.xlu0.b32.cont [9/16] 0.0, 128
    %944 = vxpose.xlu0.b32.cont [10/16] 0.0, 128
    %945 = vxpose.xlu0.b32.cont [11/16] 0.0, 128
    %946 = vxpose.xlu0.b32.cont [12/16] 0.0, 128
    %947 = vxpose.xlu0.b32.cont [13/16] 0.0, 128
    %948 = vxpose.xlu0.b32.cont [14/16] 0.0, 128
    %949 = vxpose.xlu0.b32.cont [15/16] 0.0, 128
    %950 = vxpose.xlu0.b32.end [16/16] 0.0, 128
    %v951 = vpop.trf.xlu0
    %v952 = vpop.trf.xlu0
    %v953 = vpop.trf.xlu0
    %v954 = vpop.trf.xlu0
    %v955 = vpop.trf.xlu0
    %v956 = vpop.trf.xlu0
    %v957 = vpop.trf.xlu0
    %v958 = vpop.trf.xlu0
    %v959 = vpop.trf.xlu0
    %v960 = vpop.trf.xlu0
    %v961 = vpop.trf.xlu0
    %v962 = vpop.trf.xlu0
    %v963 = vpop.trf.xlu0
    %v964 = vpop.trf.xlu0
    %v965 = vpop.trf.xlu0
    %v966 = vpop.trf.xlu0
    %967 = vst.msk [vmem:[%s870] sm:$0xff] %vm387, %v919
    %968 = vst.msk [vmem:[%s870 + $0x8] sm:$0xff] %vm387, %v920
    %969 = vst.msk [vmem:[%s870 + $0x10] sm:$0xff] %vm387, %v921
    %970 = vst.msk [vmem:[%s870 + $0x18] sm:$0xff] %vm387, %v922
    %971 = vst.msk [vmem:[%s870 + $0x20] sm:$0xff] %vm387, %v923
    %972 = vst.msk [vmem:[%s870 + $0x28] sm:$0xff] %vm387, %v924
    %973 = vst.msk [vmem:[%s870 + $0x30] sm:$0xff] %vm387, %v925
    %974 = vst.msk [vmem:[%s870 + $0x38] sm:$0xff] %vm387, %v926
    %975 = vst.msk [vmem:[%s870 + $0x40] sm:$0xff] %vm387, %v927
    %976 = vst.msk [vmem:[%s870 + $0x48] sm:$0xff] %vm387, %v928
    %977 = vst.msk [vmem:[%s870 + $0x50] sm:$0xff] %vm387, %v929
    %978 = vst.msk [vmem:[%s870 + $0x58] sm:$0xff] %vm387, %v930
    %979 = vst.msk [vmem:[%s870 + $0x60] sm:$0xff] %vm387, %v931
    %980 = vst.msk [vmem:[%s870 + $0x68] sm:$0xff] %vm387, %v932
    %981 = vst.msk [vmem:[%s870 + $0x70] sm:$0xff] %vm387, %v933
    %982 = vst.msk [vmem:[%s870 + $0x78] sm:$0xff] %vm387, %v934
    %983 = vst.msk [vmem:[%s870 + $0x80] sm:$0xff] %vm387, %v951
    %984 = vst.msk [vmem:[%s870 + $0x88] sm:$0xff] %vm387, %v952
    %985 = vst.msk [vmem:[%s870 + $0x90] sm:$0xff] %vm387, %v953
    %986 = vst.msk [vmem:[%s870 + $0x98] sm:$0xff] %vm387, %v954
    %987 = vst.msk [vmem:[%s870 + $0xa0] sm:$0xff] %vm387, %v955
    %988 = vst.msk [vmem:[%s870 + $0xa8] sm:$0xff] %vm387, %v956
    %989 = vst.msk [vmem:[%s870 + $0xb0] sm:$0xff] %vm387, %v957
    %990 = vst.msk [vmem:[%s870 + $0xb8] sm:$0xff] %vm387, %v958
    %991 = vst.msk [vmem:[%s870 + $0xc0] sm:$0xff] %vm387, %v959
    %992 = vst.msk [vmem:[%s870 + $0xc8] sm:$0xff] %vm387, %v960
    %993 = vst.msk [vmem:[%s870 + $0xd0] sm:$0xff] %vm387, %v961
    %994 = vst.msk [vmem:[%s870 + $0xd8] sm:$0xff] %vm387, %v962
    %995 = vst.msk [vmem:[%s870 + $0xe0] sm:$0xff] %vm387, %v963
    %996 = vst.msk [vmem:[%s870 + $0xe8] sm:$0xff] %vm387, %v964
    %997 = vst.msk [vmem:[%s870 + $0xf0] sm:$0xff] %vm387, %v965
    %998 = vst.msk [vmem:[%s870 + $0xf8] sm:$0xff] %vm387, %v966
    // Predicated region
    $region18: #{tpu_custom_call.1} parent=1 // pred_check
      _
    $region19: #{tpu_custom_call.1} parent=1 // pred_check_branch
      %1000 = sbr.rel (0) target = $region21
    $region20: #{tpu_custom_call.1} parent=1 // pred_region
      _
    $region21: #{tpu_custom_call.1} parent=1 // pred_fallthru
      _
    // Predicated region
    $region22: #{tpu_custom_call.1} parent=1 // pred_check
      _
    $region23: #{tpu_custom_call.1} parent=1 // pred_check_branch
      %1002 = sbr.rel (0) target = $region25
    $region24: #{tpu_custom_call.1} parent=1 // pred_region
      _
    $region25: #{tpu_custom_call.1} parent=1 // pred_fallthru
      _
    %1003 = vsyncpa [#allocation3], 1

</llo_original>
